<compile_context>
chip_gen: v7x
topology: tpu7x:2x2x1
jax: 0.10.0
libtpu: 0.0.40
codegen_flags: <defaults>
</compile_context>

<pallas_src>
import functools
import math

import jax
import jax.numpy as jnp
import numpy as np
from jax.experimental import pallas as pl
from jax.experimental.pallas import tpu as pltpu

SCALE = float(np.sqrt(np.float32(0.5)))  # torch.sqrt(FloatTensor([0.5]))


def encoder_kernel(emb_ref, w_e2h_ref, b_e2h_ref, w_conv_ref, b_conv_ref,
                   w_out_ref, b_out_ref, out_ref, *, seq_len):
    # emb_ref    : (R, E) f32     R = block_batch * seq_len rows of flattened (B*S, E)
    # w_e2h_ref  : (E, H) bf16
    # b_e2h_ref  : (1, H) f32
    # w_conv_ref : (L, K*H, 2H) bf16   per-layer fused conv weights (taps on contraction dim)
    # b_conv_ref : (L, 1, 2H) f32
    # w_out_ref  : (H, 2E) bf16   packed [w_h2e | sqrt(.5)*w_h2e]
    # b_out_ref  : (1, 2E) f32    packed [b_h2e | sqrt(.5)*b_h2e]
    # out_ref    : (R, 2E) f32    [conved | combined] packed along lanes
    emb = emb_ref[...]                                   # (R, E) f32
    R, E = emb.shape
    H = w_e2h_ref.shape[1]
    L = w_conv_ref.shape[0]
    K = w_conv_ref.shape[1] // H
    pad = (K - 1) // 2
    S = seq_len
    scale = jnp.float32(SCALE)
    mxu_dtype = w_e2h_ref.dtype                          # bf16 MXU operands

    # embed2hidden:  (R, E) @ (E, H) -> (R, H), f32 accumulation.
    h = jnp.dot(emb.astype(mxu_dtype), w_e2h_ref[...],
                preferred_element_type=jnp.float32) + b_e2h_ref[...]

    # Within-sequence position of every row (sequences packed back-to-back in the block).
    # Per-tap keep-masks realize Conv1d's zero padding AND stop rows leaking across sequence
    # boundaries inside the block (the roll is a rotation).
    pos = jax.lax.broadcasted_iota(jnp.int32, (R, 1), 0) % S
    tap_masks = []
    for k in range(K):
        off = k - pad
        if off == 0:
            tap_masks.append(None)
        elif off < 0:
            tap_masks.append((pos >= (-off)).astype(jnp.float32))
        else:
            tap_masks.append((pos < (S - off)).astype(jnp.float32))

    # EncoderConv stack: Conv1d -> GLU(channels) -> (out + input) * sqrt(0.5)
    def conv_layer(l, h):
        taps = []
        for k in range(K):
            off = k - pad
            if off == 0:
                xk = h
            else:
                # x_k[t] = h[t + off] (zero past sequence edges). XLU sublane rotate in f32,
                # masked, then cast to bf16 for the MXU.
                xk = pltpu.roll(h, (-off) % R, axis=0) * tap_masks[k]
            taps.append(xk.astype(mxu_dtype))
        x_cat = jnp.concatenate(taps, axis=-1)                            # (R, K*H) bf16
        y = jnp.dot(x_cat, w_conv_ref[l],
                    preferred_element_type=jnp.float32) + b_conv_ref[l]   # (R, 2H) f32
        glu = y[:, :H] * jax.nn.sigmoid(y[:, H:])
        return (glu + h) * scale

    if L <= 4:
        # Short stacks: unroll for LLO scheduler visibility.
        for l in range(L):
            h = conv_layer(l, h)
    else:
        # Deep stacks: real loop bounds live ranges (and composes with weight streaming).
        h = jax.lax.fori_loop(0, L, conv_layer, h)

    # Packed hidden2embed epilogue: one lane-dense (R, H) @ (H, 2E) matmul yields
    # [conved | sqrt(.5)*(conved_pre_residual)]; add sqrt(.5)*emb to the upper E lanes.
    packed = jnp.dot(h.astype(mxu_dtype), w_out_ref[...],
                     preferred_element_type=jnp.float32) + b_out_ref[...]  # (R, 2E)
    residual = jnp.concatenate([jnp.zeros_like(emb), emb * scale], axis=-1)
    out_ref[...] = (packed + residual).astype(out_ref.dtype)


def _weight_spec(shape):
    """Constant-index weight/bias block; single-buffered when supported (saves VMEM)."""
    index_map = lambda i: (0,) * len(shape)
    try:
        return pl.BlockSpec(shape, index_map, pipeline_mode=pl.Buffered(1))
    except Exception:  # older jax without pipeline_mode / Buffered -> default buffering
        return pl.BlockSpec(shape, index_map)


def _pick_block_batch(B, S, target_rows=512, min_rows=256):
    """Pick how many sequences to process per grid step.

    Constraints: must divide B; block rows (bt*S) must be a multiple of 8 (sublane tile)
    unless the block covers the whole flattened array.  Prefer >=min_rows rows (fills the
    256-wide v6e/v7x MXU), then row count closest to target, then fewer grid steps
    (v5e/v6e have a single TensorCore, so splitting small problems is pure overhead).
    """
    cands = [d for d in range(1, B + 1)
             if B % d == 0 and ((d * S) % 8 == 0 or d == B)]
    best_key, best_d = None, B
    for d in cands:
        rows = d * S
        key = (0 if rows >= min_rows else 1, abs(rows - target_rows), -d)
        if best_key is None or key < best_key:
            best_key, best_d = key, d
    return best_d


def encoder_pallas(embedded, w_e2h, b_e2h, w_conv, b_conv, w_h2e, b_h2e,
                   *, block_batch=None, mxu_dtype=jnp.bfloat16):
    B, S, E = embedded.shape
    H = w_e2h.shape[1]
    L, K = w_conv.shape[0], w_conv.shape[1]
    scale = np.float32(SCALE)

    # Fuse the K taps into one contraction dim and cast MXU-side weights to bf16.
    w_conv_f = w_conv.reshape(L, K * H, 2 * H).astype(mxu_dtype)
    w_e2h_c = w_e2h.astype(mxu_dtype)
    # Packed epilogue weights: [w_h2e | sqrt(.5)*w_h2e] -> (H, 2E); biases likewise (f32).
    w_out = jnp.concatenate([w_h2e, w_h2e * scale], axis=1).astype(mxu_dtype)
    b_out = jnp.concatenate([b_h2e, b_h2e * scale], axis=1).astype(jnp.float32)

    bt = _pick_block_batch(B, S) if block_batch is None else block_batch
    assert B % bt == 0, "block_batch must divide the batch size"
    R = bt * S
    grid = (B // bt,)

    x = embedded.reshape(B * S, E).astype(jnp.float32)

    # Explicit VMEM budget: single-buffered weights + double-buffered IO blocks
    # + in-kernel intermediates, with headroom; clamp under v7x's 64 MiB physical.
    weight_bytes = sum(int(a.size) * a.dtype.itemsize
                       for a in (w_e2h_c, b_e2h, w_conv_f, b_conv, w_out, b_out))
    io_bytes = 2 * (R * E * 4 + R * 2 * E * 4)                 # double-buffered in/out
    act_bytes = R * (3 * H * 4 + K * H * 2 + 2 * H * 4 + 4 * E * 4)  # h/taps/x_cat/y/packed
    vmem_limit = int(1.5 * (weight_bytes + io_bytes + act_bytes)) + (2 << 20)
    vmem_limit = min(max(vmem_limit, 16 << 20), 48 << 20)

    packed = pl.pallas_call(
        functools.partial(encoder_kernel, seq_len=S),
        out_shape=jax.ShapeDtypeStruct((B * S, 2 * E), jnp.float32),
        grid=grid,
        in_specs=[
            pl.BlockSpec((R, E), lambda i: (i, 0)),   # activation row-block (pipelined)
            _weight_spec((E, H)),                      # embed2hidden weight (bf16)
            _weight_spec((1, H)),                      # embed2hidden bias
            _weight_spec((L, K * H, 2 * H)),           # fused conv weights (bf16)
            _weight_spec((L, 1, 2 * H)),               # conv biases
            _weight_spec((H, 2 * E)),                  # packed hidden2embed weight (bf16)
            _weight_spec((1, 2 * E)),                  # packed hidden2embed bias
        ],
        out_specs=pl.BlockSpec((R, 2 * E), lambda i: (i, 0)),
        compiler_params=pltpu.CompilerParams(
            dimension_semantics=("parallel",),
            vmem_limit_bytes=vmem_limit),
    )(x, w_e2h_c, b_e2h, w_conv_f, b_conv, w_out, b_out)

    conved = packed[:, :E].reshape(B, S, E)
    combined = packed[:, E:].reshape(B, S, E)
    return conved, combined


def encoder_reference(embedded, w_e2h, b_e2h, w_conv, b_conv, w_h2e, b_h2e):
    """Pure-JAX f32 reference mirroring the PyTorch forward (eval mode)."""
    scale = jnp.float32(SCALE)
    h = embedded @ w_e2h + b_e2h                      # (B, S, H)
    B, S, H = h.shape
    L, K = w_conv.shape[0], w_conv.shape[1]
    pad = (K - 1) // 2
    for l in range(L):
        xp = jnp.pad(h, ((0, 0), (pad, pad), (0, 0)))
        y = sum(xp[:, k:k + S, :] @ w_conv[l, k] for k in range(K)) + b_conv[l]
        a, g = y[..., :H], y[..., H:]
        h = (a * jax.nn.sigmoid(g) + h) * scale
    conved = h @ w_h2e + b_h2e                        # (B, S, E)
    combined = (conved + embedded) * scale
    return conved, combined


if __name__ == "__main__":
    # Small but representative shapes.
    VOCAB = 50
    EMB = 64        # embedding_dim  (2*EMB = 128 -> lane-dense packed output)
    HID = 128       # hidden_size
    LAYERS = 2      # num_layers
    KSIZE = 3       # kernel_size (odd)
    MAXLEN = 100
    B, S = 2, 8

    key = jax.random.PRNGKey(0)
    keys = jax.random.split(key, 10)

    # Parameters (deterministic synthetic init; shapes follow the PyTorch module).
    tok_table = jax.random.normal(keys[0], (VOCAB, EMB), jnp.float32) * 0.1
    pos_table = jax.random.normal(keys[1], (MAXLEN, EMB), jnp.float32) * 0.1
    w_e2h = jax.random.normal(keys[2], (EMB, HID), jnp.float32) * (1.0 / math.sqrt(EMB))
    b_e2h = jax.random.normal(keys[3], (1, HID), jnp.float32) * 0.01
    # PyTorch Conv1d weight is (2H, H, K); we store the channels-last equivalent
    # W[l, k] = conv_weight[:, :, k].T of shape (H, 2H).
    w_conv = jax.random.normal(keys[4], (LAYERS, KSIZE, HID, 2 * HID), jnp.float32) * (
        1.0 / math.sqrt(HID * KSIZE))
    b_conv = jax.random.normal(keys[5], (LAYERS, 1, 2 * HID), jnp.float32) * 0.01
    w_h2e = jax.random.normal(keys[6], (HID, EMB), jnp.float32) * (1.0 / math.sqrt(HID))
    b_h2e = jax.random.normal(keys[7], (1, EMB), jnp.float32) * 0.01

    # Inputs.
    src = jax.random.randint(keys[8], (B, S), 0, VOCAB)

    # Embedding lookup + positional embedding (glue, plain JAX; dropout = identity in eval).
    tok_embedded = jnp.take(tok_table, src, axis=0)            # (B, S, EMB)
    pos_embedded = pos_table[:S][None, :, :]                   # (1, S, EMB) -> broadcast
    embedded = tok_embedded + pos_embedded                     # (B, S, EMB)

    conved, combined = encoder_pallas(embedded, w_e2h, b_e2h, w_conv, b_conv, w_h2e, b_h2e)
    jax.block_until_ready((conved, combined))

    ref_conved, ref_combined = encoder_reference(embedded, w_e2h, b_e2h, w_conv, b_conv,
                                                 w_h2e, b_h2e)
    # bf16 MXU operands with f32 accumulation -> loosened tolerances vs the f32 reference.
    np.testing.assert_allclose(np.asarray(conved), np.asarray(ref_conved),
                               rtol=2e-2, atol=2e-2)
    np.testing.assert_allclose(np.asarray(combined), np.asarray(ref_combined),
                               rtol=2e-2, atol=2e-2)

    assert conved.shape == (B, S, EMB) and combined.shape == (B, S, EMB)
    print("KERNEL_OK")
</pallas_src>

<mosaic_0001>
module attributes {stable_mosaic.version = 11 : i64} {
  func.func @encoder_kernel(%arg0: i32, %arg1: memref<16x64xf32, #tpu.memory_space<vmem>>, %arg2: memref<64x128xbf16, #tpu.memory_space<vmem>>, %arg3: memref<1x128xf32, #tpu.memory_space<vmem>>, %arg4: memref<2x384x256xbf16, #tpu.memory_space<vmem>>, %arg5: memref<2x1x256xf32, #tpu.memory_space<vmem>>, %arg6: memref<128x128xbf16, #tpu.memory_space<vmem>>, %arg7: memref<1x128xf32, #tpu.memory_space<vmem>>, %arg8: memref<16x128xf32, #tpu.memory_space<vmem>>) attributes {dimension_semantics = [#tpu.dimension_semantics<parallel>], iteration_bounds = array<i64: 1>, scalar_prefetch = 0 : i64, scratch_operands = 0 : i64, tpu.core_type = #tpu.core_type<tc>, window_params = [{transform_indices = @transform_0, window_bounds = array<i64: 16, 64>}, {pipeline_mode = #tpu.pipeline_mode<synchronous>, transform_indices = @transform_1, window_bounds = array<i64: 64, 128>}, {pipeline_mode = #tpu.pipeline_mode<synchronous>, transform_indices = @transform_2, window_bounds = array<i64: 1, 128>}, {pipeline_mode = #tpu.pipeline_mode<synchronous>, transform_indices = @transform_3, window_bounds = array<i64: 2, 384, 256>}, {pipeline_mode = #tpu.pipeline_mode<synchronous>, transform_indices = @transform_4, window_bounds = array<i64: 2, 1, 256>}, {pipeline_mode = #tpu.pipeline_mode<synchronous>, transform_indices = @transform_5, window_bounds = array<i64: 128, 128>}, {pipeline_mode = #tpu.pipeline_mode<synchronous>, transform_indices = @transform_6, window_bounds = array<i64: 1, 128>}, {transform_indices = @transform_7, window_bounds = array<i64: 16, 128>}]} {
    %c0 = arith.constant 0 : index
    %c0_0 = arith.constant 0 : index
    %0 = vector.load %arg1[%c0, %c0_0] : memref<16x64xf32, #tpu.memory_space<vmem>>, vector<16x64xf32>
    %1 = arith.truncf %0 : vector<16x64xf32> to vector<16x64xbf16>
    %c0_1 = arith.constant 0 : index
    %c0_2 = arith.constant 0 : index
    %2 = vector.load %arg2[%c0_1, %c0_2] : memref<64x128xbf16, #tpu.memory_space<vmem>>, vector<64x128xbf16>
    %cst = arith.constant dense<0.000000e+00> : vector<16x128xf32>
    %3 = tpu.matmul %1, %2, %cst {dimension_numbers = #tpu.dot_dimension_numbers<[1], [0], [0], [1], [0, 0, 1, 1], [], []>} : vector<16x64xbf16>, vector<64x128xbf16>, vector<16x128xf32> -> vector<16x128xf32>
    %c0_3 = arith.constant 0 : index
    %c0_4 = arith.constant 0 : index
    %4 = vector.load %arg3[%c0_3, %c0_4] : memref<1x128xf32, #tpu.memory_space<vmem>>, vector<1x128xf32>
    %5 = vector.broadcast %4 : vector<1x128xf32> to vector<16x128xf32>
    %6 = arith.addf %3, %5 : vector<16x128xf32>
    %7 = tpu.iota {dimensions = array<i32: 0>} : vector<16x1xi32>
    %c8_i32 = arith.constant 8 : i32
    %c0_i32 = arith.constant 0 : i32
    %8 = arith.cmpi eq, %c8_i32, %c0_i32 : i32
    %c1_i32 = arith.constant 1 : i32
    %9 = arith.select %8, %c1_i32, %c8_i32 : i32
    %10 = vector.broadcast %9 : i32 to vector<16x1xi32>
    %11 = arith.remsi %7, %10 : vector<16x1xi32>
    %c0_i32_5 = arith.constant 0 : i32
    %12 = vector.broadcast %c0_i32_5 : i32 to vector<16x1xi32>
    %13 = arith.cmpi ne, %11, %12 : vector<16x1xi32>
    %c0_i32_6 = arith.constant 0 : i32
    %14 = vector.broadcast %c0_i32_6 : i32 to vector<16x1xi32>
    %15 = arith.cmpi slt, %11, %14 : vector<16x1xi32>
    %c0_i32_7 = arith.constant 0 : i32
    %16 = arith.cmpi slt, %9, %c0_i32_7 : i32
    %17 = vector.broadcast %16 : i1 to vector<16x1xi1>
    %18 = vector.broadcast %17 : vector<16x1xi1> to vector<16x1xi1>
    %19 = arith.xori %15, %18 : vector<16x1xi1>
    %20 = arith.andi %19, %13 : vector<16x1xi1>
    %21 = vector.broadcast %9 : i32 to vector<16x1xi32>
    %22 = arith.addi %11, %21 : vector<16x1xi32>
    %23 = arith.select %20, %22, %11 : vector<16x1xi1>, vector<16x1xi32>
    %c1_i32_8 = arith.constant 1 : i32
    %24 = vector.broadcast %c1_i32_8 : i32 to vector<16x1xi32>
    %25 = arith.cmpi sge, %23, %24 : vector<16x1xi32>
    %26 = arith.extui %25 : vector<16x1xi1> to vector<16x1xi32>
    %27 = arith.sitofp %26 : vector<16x1xi32> to vector<16x1xf32>
    %c7_i32 = arith.constant 7 : i32
    %28 = vector.broadcast %c7_i32 : i32 to vector<16x1xi32>
    %29 = arith.cmpi slt, %23, %28 : vector<16x1xi32>
    %30 = arith.extui %29 : vector<16x1xi1> to vector<16x1xi32>
    %31 = arith.sitofp %30 : vector<16x1xi32> to vector<16x1xf32>
    %c1_i32_9 = arith.constant 1 : i32
    %32 = tpu.dynamic_rotate %6 by %c1_i32_9 dim 0 : vector<16x128xf32>, i32 -> vector<16x128xf32>
    %33 = vector.broadcast %27 : vector<16x1xf32> to vector<16x128xf32>
    %34 = arith.mulf %32, %33 : vector<16x128xf32>
    %35 = arith.truncf %34 : vector<16x128xf32> to vector<16x128xbf16>
    %36 = arith.truncf %6 : vector<16x128xf32> to vector<16x128xbf16>
    %c15_i32 = arith.constant 15 : i32
    %37 = tpu.dynamic_rotate %6 by %c15_i32 dim 0 : vector<16x128xf32>, i32 -> vector<16x128xf32>
    %38 = vector.broadcast %31 : vector<16x1xf32> to vector<16x128xf32>
    %39 = arith.mulf %37, %38 : vector<16x128xf32>
    %40 = arith.truncf %39 : vector<16x128xf32> to vector<16x128xbf16>
    %41 = tpu.concatenate %35, %36, %40 in 1 : vector<16x128xbf16>, vector<16x128xbf16>, vector<16x128xbf16> -> vector<16x384xbf16>
    %c0_10 = arith.constant 0 : index
    %c0_11 = arith.constant 0 : index
    %c0_12 = arith.constant 0 : index
    %42 = vector.load %arg4[%c0_10, %c0_11, %c0_12] : memref<2x384x256xbf16, #tpu.memory_space<vmem>>, vector<1x384x256xbf16>
    %43 = vector.shape_cast %42 : vector<1x384x256xbf16> to vector<384x256xbf16>
    %cst_13 = arith.constant dense<0.000000e+00> : vector<16x256xf32>
    %44 = tpu.matmul %41, %43, %cst_13 {dimension_numbers = #tpu.dot_dimension_numbers<[1], [0], [0], [1], [0, 0, 1, 1], [], []>} : vector<16x384xbf16>, vector<384x256xbf16>, vector<16x256xf32> -> vector<16x256xf32>
    %c0_14 = arith.constant 0 : index
    %c0_15 = arith.constant 0 : index
    %c0_16 = arith.constant 0 : index
    %45 = vector.load %arg5[%c0_14, %c0_15, %c0_16] : memref<2x1x256xf32, #tpu.memory_space<vmem>>, vector<1x1x256xf32>
    %46 = vector.shape_cast %45 : vector<1x1x256xf32> to vector<1x256xf32>
    %47 = vector.broadcast %46 : vector<1x256xf32> to vector<16x256xf32>
    %48 = arith.addf %44, %47 : vector<16x256xf32>
    %49 = vector.extract_strided_slice %48 {offsets = [0, 0], sizes = [16, 128], strides = [1, 1]} : vector<16x256xf32> to vector<16x128xf32>
    %50 = vector.extract_strided_slice %48 {offsets = [0, 128], sizes = [16, 128], strides = [1, 1]} : vector<16x256xf32> to vector<16x128xf32>
    %51 = arith.negf %50 : vector<16x128xf32>
    %52 = math.exp %51 : vector<16x128xf32>
    %cst_17 = arith.constant 1.000000e+00 : f32
    %53 = vector.broadcast %cst_17 : f32 to vector<16x128xf32>
    %54 = arith.addf %53, %52 : vector<16x128xf32>
    %55 = arith.divf %53, %54 : vector<16x128xf32>
    %56 = arith.mulf %49, %55 : vector<16x128xf32>
    %57 = arith.addf %56, %6 : vector<16x128xf32>
    %cst_18 = arith.constant 0.707106769 : f32
    %58 = vector.broadcast %cst_18 : f32 to vector<16x128xf32>
    %59 = arith.mulf %57, %58 : vector<16x128xf32>
    %c1_i32_19 = arith.constant 1 : i32
    %60 = tpu.dynamic_rotate %59 by %c1_i32_19 dim 0 : vector<16x128xf32>, i32 -> vector<16x128xf32>
    %61 = vector.broadcast %27 : vector<16x1xf32> to vector<16x128xf32>
    %62 = arith.mulf %60, %61 : vector<16x128xf32>
    %63 = arith.truncf %62 : vector<16x128xf32> to vector<16x128xbf16>
    %64 = arith.truncf %59 : vector<16x128xf32> to vector<16x128xbf16>
    %c15_i32_20 = arith.constant 15 : i32
    %65 = tpu.dynamic_rotate %59 by %c15_i32_20 dim 0 : vector<16x128xf32>, i32 -> vector<16x128xf32>
    %66 = vector.broadcast %31 : vector<16x1xf32> to vector<16x128xf32>
    %67 = arith.mulf %65, %66 : vector<16x128xf32>
    %68 = arith.truncf %67 : vector<16x128xf32> to vector<16x128xbf16>
    %69 = tpu.concatenate %63, %64, %68 in 1 : vector<16x128xbf16>, vector<16x128xbf16>, vector<16x128xbf16> -> vector<16x384xbf16>
    %c1 = arith.constant 1 : index
    %c0_21 = arith.constant 0 : index
    %c0_22 = arith.constant 0 : index
    %70 = vector.load %arg4[%c1, %c0_21, %c0_22] : memref<2x384x256xbf16, #tpu.memory_space<vmem>>, vector<1x384x256xbf16>
    %71 = vector.shape_cast %70 : vector<1x384x256xbf16> to vector<384x256xbf16>
    %cst_23 = arith.constant dense<0.000000e+00> : vector<16x256xf32>
    %72 = tpu.matmul %69, %71, %cst_23 {dimension_numbers = #tpu.dot_dimension_numbers<[1], [0], [0], [1], [0, 0, 1, 1], [], []>} : vector<16x384xbf16>, vector<384x256xbf16>, vector<16x256xf32> -> vector<16x256xf32>
    %c1_24 = arith.constant 1 : index
    %c0_25 = arith.constant 0 : index
    %c0_26 = arith.constant 0 : index
    %73 = vector.load %arg5[%c1_24, %c0_25, %c0_26] : memref<2x1x256xf32, #tpu.memory_space<vmem>>, vector<1x1x256xf32>
    %74 = vector.shape_cast %73 : vector<1x1x256xf32> to vector<1x256xf32>
    %75 = vector.broadcast %74 : vector<1x256xf32> to vector<16x256xf32>
    %76 = arith.addf %72, %75 : vector<16x256xf32>
    %77 = vector.extract_strided_slice %76 {offsets = [0, 0], sizes = [16, 128], strides = [1, 1]} : vector<16x256xf32> to vector<16x128xf32>
    %78 = vector.extract_strided_slice %76 {offsets = [0, 128], sizes = [16, 128], strides = [1, 1]} : vector<16x256xf32> to vector<16x128xf32>
    %79 = arith.negf %78 : vector<16x128xf32>
    %80 = math.exp %79 : vector<16x128xf32>
    %cst_27 = arith.constant 1.000000e+00 : f32
    %81 = vector.broadcast %cst_27 : f32 to vector<16x128xf32>
    %82 = arith.addf %81, %80 : vector<16x128xf32>
    %83 = arith.divf %81, %82 : vector<16x128xf32>
    %84 = arith.mulf %77, %83 : vector<16x128xf32>
    %85 = arith.addf %84, %59 : vector<16x128xf32>
    %cst_28 = arith.constant 0.707106769 : f32
    %86 = vector.broadcast %cst_28 : f32 to vector<16x128xf32>
    %87 = arith.mulf %85, %86 : vector<16x128xf32>
    %88 = arith.truncf %87 : vector<16x128xf32> to vector<16x128xbf16>
    %c0_29 = arith.constant 0 : index
    %c0_30 = arith.constant 0 : index
    %89 = vector.load %arg6[%c0_29, %c0_30] : memref<128x128xbf16, #tpu.memory_space<vmem>>, vector<128x128xbf16>
    %cst_31 = arith.constant dense<0.000000e+00> : vector<16x128xf32>
    %90 = tpu.matmul %88, %89, %cst_31 {dimension_numbers = #tpu.dot_dimension_numbers<[1], [0], [0], [1], [0, 0, 1, 1], [], []>} : vector<16x128xbf16>, vector<128x128xbf16>, vector<16x128xf32> -> vector<16x128xf32>
    %c0_32 = arith.constant 0 : index
    %c0_33 = arith.constant 0 : index
    %91 = vector.load %arg7[%c0_32, %c0_33] : memref<1x128xf32, #tpu.memory_space<vmem>>, vector<1x128xf32>
    %92 = vector.broadcast %91 : vector<1x128xf32> to vector<16x128xf32>
    %93 = arith.addf %90, %92 : vector<16x128xf32>
    %cst_34 = arith.constant 0.000000e+00 : f32
    %94 = vector.broadcast %cst_34 : f32 to vector<16x64xf32>
    %cst_35 = arith.constant 0.707106769 : f32
    %95 = vector.broadcast %cst_35 : f32 to vector<16x64xf32>
    %96 = arith.mulf %0, %95 : vector<16x64xf32>
    %97 = tpu.concatenate %94, %96 in 1 : vector<16x64xf32>, vector<16x64xf32> -> vector<16x128xf32>
    %98 = arith.addf %93, %97 : vector<16x128xf32>
    %c0_36 = arith.constant 0 : index
    %c0_37 = arith.constant 0 : index
    %99 = vector.load %arg8[%c0_36, %c0_37] : memref<16x128xf32, #tpu.memory_space<vmem>>, vector<16x128xf32>
    tpu.vector_store %arg8[%c0_36, %c0_37], %98 {strides = array<i32>} : memref<16x128xf32, #tpu.memory_space<vmem>>, vector<16x128xf32>,
    return
  }
  func.func @transform_0(%arg0: i32) -> (i32, i32) {
    %c0_i32 = arith.constant 0 : i32
    %c0_i32_0 = arith.constant 0 : i32
    return %arg0, %c0_i32 : i32, i32
  }
  func.func @transform_1(%arg0: i32) -> (i32, i32) {
    %c0_i32 = arith.constant 0 : i32
    %c0_i32_0 = arith.constant 0 : i32
    %c0_i32_1 = arith.constant 0 : i32
    return %c0_i32, %c0_i32_0 : i32, i32
  }
  func.func @transform_2(%arg0: i32) -> (i32, i32) {
    %c0_i32 = arith.constant 0 : i32
    %c0_i32_0 = arith.constant 0 : i32
    %c0_i32_1 = arith.constant 0 : i32
    return %c0_i32, %c0_i32_0 : i32, i32
  }
  func.func @transform_3(%arg0: i32) -> (i32, i32, i32) {
    %c0_i32 = arith.constant 0 : i32
    %c0_i32_0 = arith.constant 0 : i32
    %c0_i32_1 = arith.constant 0 : i32
    %c0_i32_2 = arith.constant 0 : i32
    return %c0_i32, %c0_i32_0, %c0_i32_1 : i32, i32, i32
  }
  func.func @transform_4(%arg0: i32) -> (i32, i32, i32) {
    %c0_i32 = arith.constant 0 : i32
    %c0_i32_0 = arith.constant 0 : i32
    %c0_i32_1 = arith.constant 0 : i32
    %c0_i32_2 = arith.constant 0 : i32
    return %c0_i32, %c0_i32_0, %c0_i32_1 : i32, i32, i32
  }
  func.func @transform_5(%arg0: i32) -> (i32, i32) {
    %c0_i32 = arith.constant 0 : i32
    %c0_i32_0 = arith.constant 0 : i32
    %c0_i32_1 = arith.constant 0 : i32
    return %c0_i32, %c0_i32_0 : i32, i32
  }
  func.func @transform_6(%arg0: i32) -> (i32, i32) {
    %c0_i32 = arith.constant 0 : i32
    %c0_i32_0 = arith.constant 0 : i32
    %c0_i32_1 = arith.constant 0 : i32
    return %c0_i32, %c0_i32_0 : i32, i32
  }
  func.func @transform_7(%arg0: i32) -> (i32, i32) {
    %c0_i32 = arith.constant 0 : i32
    %c0_i32_0 = arith.constant 0 : i32
    return %arg0, %c0_i32 : i32, i32
  }
}

</mosaic_0001>

<llo_original>
// kernel: tpu_custom_call.1
$region0: #{tpu_custom_call.1}
  #allocation0 [shape = 'u32[]', space=smem, size = 0x4, offset = 0x4, fixed_abs, tag = 'smem constant byte address 0x4 - core index']
  #allocation1 [shape = 'u32[144,128]{1,0:T(1,128)}', space=vmem, size = 0x12000, scoped, tag = 'internal scratch']
  %s0 = inlined_call_operand.hbm [shape: f32[16,64], index: 0, kind: input, shape index: {}]
  %s1 = inlined_call_operand.hbm [shape: bf16[64,128], index: 1, kind: input, shape index: {}]
  %s2 = inlined_call_operand.vmem [shape: f32[1,128], index: 2, kind: input, shape index: {}]
  %s3 = inlined_call_operand.hbm [shape: bf16[2,384,256], index: 3, kind: input, shape index: {}]
  %s4 = inlined_call_operand.vmem [shape: f32[2,1,256], index: 4, kind: input, shape index: {}]
  %s5 = inlined_call_operand.hbm [shape: bf16[128,128], index: 5, kind: input, shape index: {}]
  %s6 = inlined_call_operand.vmem [shape: f32[1,128], index: 6, kind: input, shape index: {}]
  %s7 = inlined_call_operand.hbm [shape: f32[16,128], index: 7, kind: output, shape index: {}]
  %s8 = sld [smem:[#allocation0]]
  $region54: #{tpu_custom_call.1} parent=0
    _
  %s10 = ssub.s32 1, %s8
  %s11 = scalar_select 0, %s10, %s8
  $region1: #{tpu_custom_call.1} parent=0
    #allocation2 [shape = 'u8[8192]{0}', space=vmem, size = 0x2000, scoped, tag = 'input window, operand 0, single buffered']
    #allocation3 [shape = 's32[1]{0}', space=sflag, size = 0x4, scoped, tag = 'scoped memory for tpu_custom_call.1']
    #allocation4 [shape = 's32[1]{0}', space=sflag, size = 0x4, scoped, tag = 'scoped memory for tpu_custom_call.1']
    #allocation5 [shape = 'u8[16384]{0}', space=vmem, size = 0x4000, scoped, tag = 'input window, operand 1, single buffered']
    #allocation6 [shape = 's32[1]{0}', space=sflag, size = 0x4, scoped, tag = 'scoped memory for tpu_custom_call.1']
    #allocation7 [shape = 'u8[393216]{0}', space=vmem, size = 0x60000, scoped, tag = 'input window, operand 3, single buffered']
    #allocation8 [shape = 'u8[32768]{0}', space=vmem, size = 0x8000, scoped, tag = 'input window, operand 5, single buffered']
    #allocation9 [shape = 's32[1]{0}', space=sflag, size = 0x4, scoped, tag = 'scoped memory for tpu_custom_call.1']
    #allocation10 [shape = 'u8[8192]{0}', space=vmem, size = 0x2000, scoped, tag = 'output window, operand 0, single buffered']
    %12 = vsyncpa [#allocation3], 0
    %13 = vsyncpa [#allocation6], 0
    %14 = vsyncpa [#allocation9], 0
    %15 = vsyncpa [#allocation4], 0
    // Predicated region
    $region2: #{tpu_custom_call.1} parent=1 // pred_check
      _
    $region3: #{tpu_custom_call.1} parent=1 // pred_check_branch
      %17 = sbr.rel (0) target = $region5
    $region4: #{tpu_custom_call.1} parent=1 // pred_region
      %s19 = ssub.s32 256, 256
      %20 = vsyncadd [#allocation3], %s19
      %s21 = sshll.u32 [#allocation2], 4
      %s22 = int_to_ptr.vmem [resolvable:$true] %s21
      %27 = dma.hbm_to_vmem [thread:$0]  %s0, 256, %s22, [#allocation3], 128, 128, 8
    $region5: #{tpu_custom_call.1} parent=1 // pred_fallthru
      _
    // Predicated region
    $region6: #{tpu_custom_call.1} parent=1 // pred_check
      _
    $region7: #{tpu_custom_call.1} parent=1 // pred_check_branch
      %29 = sbr.rel (0) target = $region9
    $region8: #{tpu_custom_call.1} parent=1 // pred_region
      %s31 = ssub.s32 512, 512
      %32 = vsyncadd [#allocation6], %s31
      %s33 = sshll.u32 [#allocation5], 4
      %s34 = int_to_ptr.vmem [resolvable:$true] %s33
      %39 = dma.hbm_to_vmem [thread:$0]  %s1, 512, %s34, [#allocation6], 64, 64, 4
    $region9: #{tpu_custom_call.1} parent=1 // pred_fallthru
      _
    // Predicated region
    $region10: #{tpu_custom_call.1} parent=1 // pred_check
      _
    $region11: #{tpu_custom_call.1} parent=1 // pred_check_branch
      %41 = sbr.rel (0) target = $region13
    $region12: #{tpu_custom_call.1} parent=1 // pred_region
      _
    $region13: #{tpu_custom_call.1} parent=1 // pred_fallthru
      _
    // Predicated region
    $region14: #{tpu_custom_call.1} parent=1 // pred_check
      _
    $region15: #{tpu_custom_call.1} parent=1 // pred_check_branch
      %43 = sbr.rel (0) target = $region17
    $region16: #{tpu_custom_call.1} parent=1 // pred_region
      %s45 = ssub.s32 12288, 12288
      %46 = vsyncadd [#allocation6], %s45
      %s47 = sshll.u32 [#allocation7], 4
      %s48 = int_to_ptr.vmem [resolvable:$true] %s47
      %53 = dma.hbm_to_vmem [thread:$0]  %s3, 12288, %s48, [#allocation6], 128, 128, 8
    $region17: #{tpu_custom_call.1} parent=1 // pred_fallthru
      _
    // Predicated region
    $region18: #{tpu_custom_call.1} parent=1 // pred_check
      _
    $region19: #{tpu_custom_call.1} parent=1 // pred_check_branch
      %55 = sbr.rel (0) target = $region21
    $region20: #{tpu_custom_call.1} parent=1 // pred_region
      _
    $region21: #{tpu_custom_call.1} parent=1 // pred_fallthru
      _
    // Predicated region
    $region22: #{tpu_custom_call.1} parent=1 // pred_check
      _
    $region23: #{tpu_custom_call.1} parent=1 // pred_check_branch
      %57 = sbr.rel (0) target = $region25
    $region24: #{tpu_custom_call.1} parent=1 // pred_region
      %s59 = ssub.s32 1024, 1024
      %60 = vsyncadd [#allocation9], %s59
      %s61 = sshll.u32 [#allocation8], 4
      %s62 = int_to_ptr.vmem [resolvable:$true] %s61
      %67 = dma.hbm_to_vmem [thread:$0]  %s5, 1024, %s62, [#allocation9], 64, 64, 4
    $region25: #{tpu_custom_call.1} parent=1 // pred_fallthru
      _
    // Predicated region
    $region26: #{tpu_custom_call.1} parent=1 // pred_check
      _
    $region27: #{tpu_custom_call.1} parent=1 // pred_check_branch
      %69 = sbr.rel (0) target = $region29
    $region28: #{tpu_custom_call.1} parent=1 // pred_region
      _
    $region29: #{tpu_custom_call.1} parent=1 // pred_fallthru
      _
    // Predicated region
    $region30: #{tpu_custom_call.1} parent=1 // pred_check
      _
    $region31: #{tpu_custom_call.1} parent=1 // pred_check_branch
      %71 = sbr.rel (0) target = $region33
    $region32: #{tpu_custom_call.1} parent=1 // pred_region
      %72 = dma.done [#allocation3], 256
    $region33: #{tpu_custom_call.1} parent=1 // pred_fallthru
      _
    // Predicated region
    $region34: #{tpu_custom_call.1} parent=1 // pred_check
      _
    $region35: #{tpu_custom_call.1} parent=1 // pred_check_branch
      %74 = sbr.rel (0) target = $region37
    $region36: #{tpu_custom_call.1} parent=1 // pred_region
      %75 = dma.done [#allocation6], 512
    $region37: #{tpu_custom_call.1} parent=1 // pred_fallthru
      _
    // Predicated region
    $region38: #{tpu_custom_call.1} parent=1 // pred_check
      _
    $region39: #{tpu_custom_call.1} parent=1 // pred_check_branch
      %77 = sbr.rel (0) target = $region41
    $region40: #{tpu_custom_call.1} parent=1 // pred_region
      %78 = dma.done [#allocation6], 12288
    $region41: #{tpu_custom_call.1} parent=1 // pred_fallthru
      _
    // Predicated region
    $region42: #{tpu_custom_call.1} parent=1 // pred_check
      _
    $region43: #{tpu_custom_call.1} parent=1 // pred_check_branch
      %80 = sbr.rel (0) target = $region45
    $region44: #{tpu_custom_call.1} parent=1 // pred_region
      %81 = dma.done [#allocation9], 1024
    $region45: #{tpu_custom_call.1} parent=1 // pred_fallthru
      _
    %v83 = vld [vmem:[#allocation2] sm:$0xff]
    %v84 = vld [vmem:[#allocation2 + $0x8] sm:$0xff]
    %v85 = vpack.c.bf16 %v84, %v83
    %v86 = vld [vmem:[#allocation5] sm:$0xf]
    %v87 = vld [vmem:[#allocation5 + $0x4] sm:$0xf]
    %v88 = vld [vmem:[#allocation5 + $0x8] sm:$0xf]
    %v89 = vld [vmem:[#allocation5 + $0xc] sm:$0xf]
    %v90 = vld [vmem:[#allocation5 + $0x10] sm:$0xf]
    %v91 = vld [vmem:[#allocation5 + $0x14] sm:$0xf]
    %v92 = vld [vmem:[#allocation5 + $0x18] sm:$0xf]
    %v93 = vld [vmem:[#allocation5 + $0x1c] sm:$0xf]
    %v94 = vld [vmem:[%s2] sm:$0x1]
    %v96 = vlaneseq
    %v97 = vshrl.u32 %v96, 7
    %v98 = vsub.s32 0, %v97
    %v99 = vrot.slane %v94, %v98
    %v109 = vunpack.c.l.b16 %v86
    %v110 = vunpack.c.l.b16 %v87
    %v111 = vunpack.c.l.b16 %v88
    %v112 = vunpack.c.l.b16 %v89
    %v113 = vunpack.c.l.b16 %v90
    %v114 = vunpack.c.l.b16 %v91
    %v115 = vunpack.c.l.b16 %v92
    %v116 = vunpack.c.l.b16 %v93
    %v117 = vpack.c.b16 %v110, %v109
    %v118 = vpack.c.b16 %v112, %v111
    %v119 = vpack.c.b16 %v114, %v113
    %v120 = vpack.c.b16 %v116, %v115
    %vm125 = vcmask 523264
    %v127 = vsel %vm125, %v85, 0
    %129 = vmatprep.subr.bf16.mxu0 0
    %130 = vmatpush1.bf16.msra.mxu0 %v117
    %131 = vmatprep.subr.bf16.mxu0 0
    %132 = vmatpush1.bf16.msra.mxu0 %v118
    %133 = vmatprep.subr.bf16.mxu0 0
    %134 = vmatpush1.bf16.msra.mxu0 %v119
    %135 = vmatprep.subr.bf16.mxu0 0
    %136 = vmatpush1.bf16.msra.mxu0 %v120
    %137 = vmatprep.subr.bf16.mxu0 0
    %138 = vmatpush1.bf16.msra.mxu0 0
    %139 = vmatprep.subr.bf16.mxu0 0
    %140 = vmatpush1.bf16.msra.mxu0 0
    %141 = vmatprep.subr.bf16.mxu0 0
    %142 = vmatpush1.bf16.msra.mxu0 0
    %143 = vmatprep.subr.bf16.mxu0 0
    %144 = vmatpush1.bf16.msra.mxu0 0
    %145 = vmatprep.subr.bf16.mxu0 0
    %146 = vmatpush1.bf16.msra.mxu0 0
    %147 = vmatprep.subr.bf16.mxu0 0
    %148 = vmatpush1.bf16.msra.mxu0 0
    %149 = vmatprep.subr.bf16.mxu0 0
    %150 = vmatpush1.bf16.msra.mxu0 0
    %151 = vmatprep.subr.bf16.mxu0 0
    %152 = vmatpush1.bf16.msra.mxu0 0
    %153 = vmatprep.subr.bf16.mxu0 0
    %154 = vmatpush1.bf16.msra.mxu0 0
    %155 = vmatprep.subr.bf16.mxu0 0
    %156 = vmatpush1.bf16.msra.mxu0 0
    %157 = vmatprep.subr.bf16.mxu0 0
    %158 = vmatpush1.bf16.msra.mxu0 0
    %159 = vmatprep.subr.bf16.mxu0 0
    %160 = vmatpush1.bf16.msra.mxu0 0
    %161 = vmatprep.mubr.bf16.mxu0 0
    %162 = vmatmul.mubr.bf16.gmra.mrb[0].mxu0 %v127
    %v163 = vpop.f32.mrb[0].mxu0
    %v164 = vadd.f32 %v99, %v163
    %v165 = vpop.f32.mrb[0].mxu0
    %v166 = vpop.f32.mrb[0].mxu0
    %v167 = vadd.f32 %v99, %v166
    %v168 = vpop.f32.mrb[0].mxu0
    %169 = vdwg.mxu0
    %v170 = vlaneseq
    %v171 = vshrl.u32 %v170, 7
    %v172 = vadd.s32 %v171, 8
    %vm173 = vcmp.lt.s32.totalorder %v171, 0
    %v174 = vsub.s32 0, %v171
    %v175 = vsel %vm173, %v174, %v171
    %v176 = vshrl.u32 %v175, 3
    %v177 = vand.u32 %v175, 7
    %v178 = vsub.s32 0, %v177
    %v179 = vsel %vm173, %v178, %v177
    %vm180 = vcmp.lt.s32.totalorder %v172, 0
    %v181 = vsub.s32 0, %v172
    %v182 = vsel %vm180, %v181, %v172
    %v183 = vshrl.u32 %v182, 3
    %v184 = vand.u32 %v182, 7
    %v185 = vsub.s32 0, %v184
    %v186 = vsel %vm180, %v185, %v184
    %vm187 = vcmp.ne.s32.totalorder %v179, 0
    %vm188 = vcmp.ne.s32.totalorder %v186, 0
    %vm189 = vcmp.lt.s32.totalorder %v179, 0
    %vm190 = vcmp.lt.s32.totalorder %v186, 0
    %vm191 = vmand %vm189, %vm187
    %vm192 = vmand %vm190, %vm188
    %v193 = vadd.s32 %v179, 8
    %v194 = vadd.s32 %v186, 8
    %v195 = vsel %vm191, %v193, %v179
    %v196 = vsel %vm192, %v194, %v186
    %vm197 = vcmp.ge.s32.totalorder %v195, 1
    %vm198 = vcmp.ge.s32.totalorder %v196, 1
    %v199 = vsel %vm197, 1, 0
    %v200 = vsel %vm198, 1, 0
    %v201 = vcvt.s32.f32 %v199
    %v202 = vcvt.s32.f32 %v200
    %vm203 = vcmp.lt.s32.totalorder %v195, 7
    %vm204 = vcmp.lt.s32.totalorder %v196, 7
    %v205 = vsel %vm203, 1, 0
    %v206 = vsel %vm204, 1, 0
    %v207 = vcvt.s32.f32 %v205
    %v208 = vcvt.s32.f32 %v206
    %v209 = vrot.slane %v164, 7
    %v210 = vrot.slane %v167, 7
    %vm211 = vcmp.lt.s32.totalorder %v171, 1
    %v212 = vsel %vm211, %v209, %v210
    %v213 = vsel %vm211, %v210, %v209
    %v214 = vmul.f32 %v213, %v201
    %v215 = vmul.f32 %v212, %v202
    %v216 = vpack.c.bf16 %v215, %v214
    %v217 = vpack.c.bf16 %v167, %v164
    %v218 = vrot.slane %v164, 1
    %v219 = vrot.slane %v167, 1
    %vm220 = vcmp.lt.s32.totalorder %v171, 7
    %v221 = vsel %vm220, %v218, %v219
    %v222 = vsel %vm220, %v219, %v218
    %v223 = vmul.f32 %v221, %v207
    %v224 = vmul.f32 %v222, %v208
    %v225 = vpack.c.bf16 %v224, %v223
    %v226 = vld [vmem:[#allocation7] sm:$0xff]
    %v227 = vld [vmem:[#allocation7 + $0x8] sm:$0xff]
    %v228 = vld [vmem:[#allocation7 + $0x10] sm:$0xff]
    %v229 = vld [vmem:[#allocation7 + $0x18] sm:$0xff]
    %v230 = vld [vmem:[#allocation7 + $0x20] sm:$0xff]
    %v231 = vld [vmem:[#allocation7 + $0x28] sm:$0xff]
    %v232 = vld [vmem:[#allocation7 + $0x30] sm:$0xff]
    %v233 = vld [vmem:[#allocation7 + $0x38] sm:$0xff]
    %v234 = vld [vmem:[#allocation7 + $0x40] sm:$0xff]
    %v235 = vld [vmem:[#allocation7 + $0x48] sm:$0xff]
    %v236 = vld [vmem:[#allocation7 + $0x50] sm:$0xff]
    %v237 = vld [vmem:[#allocation7 + $0x58] sm:$0xff]
    %v238 = vld [vmem:[#allocation7 + $0x60] sm:$0xff]
    %v239 = vld [vmem:[#allocation7 + $0x68] sm:$0xff]
    %v240 = vld [vmem:[#allocation7 + $0x70] sm:$0xff]
    %v241 = vld [vmem:[#allocation7 + $0x78] sm:$0xff]
    %v242 = vld [vmem:[#allocation7 + $0x80] sm:$0xff]
    %v243 = vld [vmem:[#allocation7 + $0x88] sm:$0xff]
    %v244 = vld [vmem:[#allocation7 + $0x90] sm:$0xff]
    %v245 = vld [vmem:[#allocation7 + $0x98] sm:$0xff]
    %v246 = vld [vmem:[#allocation7 + $0xa0] sm:$0xff]
    %v247 = vld [vmem:[#allocation7 + $0xa8] sm:$0xff]
    %v248 = vld [vmem:[#allocation7 + $0xb0] sm:$0xff]
    %v249 = vld [vmem:[#allocation7 + $0xb8] sm:$0xff]
    %v250 = vld [vmem:[#allocation7 + $0xc0] sm:$0xff]
    %v251 = vld [vmem:[#allocation7 + $0xc8] sm:$0xff]
    %v252 = vld [vmem:[#allocation7 + $0xd0] sm:$0xff]
    %v253 = vld [vmem:[#allocation7 + $0xd8] sm:$0xff]
    %v254 = vld [vmem:[#allocation7 + $0xe0] sm:$0xff]
    %v255 = vld [vmem:[#allocation7 + $0xe8] sm:$0xff]
    %v256 = vld [vmem:[#allocation7 + $0xf0] sm:$0xff]
    %v257 = vld [vmem:[#allocation7 + $0xf8] sm:$0xff]
    %v258 = vld [vmem:[#allocation7 + $0x100] sm:$0xff]
    %v259 = vld [vmem:[#allocation7 + $0x108] sm:$0xff]
    %v260 = vld [vmem:[#allocation7 + $0x110] sm:$0xff]
    %v261 = vld [vmem:[#allocation7 + $0x118] sm:$0xff]
    %v262 = vld [vmem:[#allocation7 + $0x120] sm:$0xff]
    %v263 = vld [vmem:[#allocation7 + $0x128] sm:$0xff]
    %v264 = vld [vmem:[#allocation7 + $0x130] sm:$0xff]
    %v265 = vld [vmem:[#allocation7 + $0x138] sm:$0xff]
    %v266 = vld [vmem:[#allocation7 + $0x140] sm:$0xff]
    %v267 = vld [vmem:[#allocation7 + $0x148] sm:$0xff]
    %v268 = vld [vmem:[#allocation7 + $0x150] sm:$0xff]
    %v269 = vld [vmem:[#allocation7 + $0x158] sm:$0xff]
    %v270 = vld [vmem:[#allocation7 + $0x160] sm:$0xff]
    %v271 = vld [vmem:[#allocation7 + $0x168] sm:$0xff]
    %v272 = vld [vmem:[#allocation7 + $0x170] sm:$0xff]
    %v273 = vld [vmem:[#allocation7 + $0x178] sm:$0xff]
    %v274 = vld [vmem:[%s4] sm:$0x3]
    %v276 = vlaneseq
    %v277 = vshrl.u32 %v276, 7
    %v278 = vsub.s32 0, %v277
    %v279 = vrot.slane %v274, %v278
    %v280 = vlaneseq
    %v281 = vshrl.u32 %v280, 7
    %v282 = vsub.s32 1, %v281
    %v283 = vrot.slane %v274, %v282
    %v334 = vunpack.c.l.b16 %v226
    %v335 = vunpack.c.h.b16 %v226
    %v336 = vunpack.c.l.b16 %v227
    %v337 = vunpack.c.h.b16 %v227
    %v338 = vunpack.c.l.b16 %v228
    %v339 = vunpack.c.h.b16 %v228
    %v340 = vunpack.c.l.b16 %v229
    %v341 = vunpack.c.h.b16 %v229
    %v342 = vunpack.c.l.b16 %v230
    %v343 = vunpack.c.h.b16 %v230
    %v344 = vunpack.c.l.b16 %v231
    %v345 = vunpack.c.h.b16 %v231
    %v346 = vunpack.c.l.b16 %v232
    %v347 = vunpack.c.h.b16 %v232
    %v348 = vunpack.c.l.b16 %v233
    %v349 = vunpack.c.h.b16 %v233
    %v350 = vunpack.c.l.b16 %v234
    %v351 = vunpack.c.h.b16 %v234
    %v352 = vunpack.c.l.b16 %v235
    %v353 = vunpack.c.h.b16 %v235
    %v354 = vunpack.c.l.b16 %v236
    %v355 = vunpack.c.h.b16 %v236
    %v356 = vunpack.c.l.b16 %v237
    %v357 = vunpack.c.h.b16 %v237
    %v358 = vunpack.c.l.b16 %v238
    %v359 = vunpack.c.h.b16 %v238
    %v360 = vunpack.c.l.b16 %v239
    %v361 = vunpack.c.h.b16 %v239
    %v362 = vunpack.c.l.b16 %v240
    %v363 = vunpack.c.h.b16 %v240
    %v364 = vunpack.c.l.b16 %v241
    %v365 = vunpack.c.h.b16 %v241
    %v366 = vunpack.c.l.b16 %v242
    %v367 = vunpack.c.h.b16 %v242
    %v368 = vunpack.c.l.b16 %v243
    %v369 = vunpack.c.h.b16 %v243
    %v370 = vunpack.c.l.b16 %v244
    %v371 = vunpack.c.h.b16 %v244
    %v372 = vunpack.c.l.b16 %v245
    %v373 = vunpack.c.h.b16 %v245
    %v374 = vunpack.c.l.b16 %v246
    %v375 = vunpack.c.h.b16 %v246
    %v376 = vunpack.c.l.b16 %v247
    %v377 = vunpack.c.h.b16 %v247
    %v378 = vunpack.c.l.b16 %v248
    %v379 = vunpack.c.h.b16 %v248
    %v380 = vunpack.c.l.b16 %v249
    %v381 = vunpack.c.h.b16 %v249
    %v382 = vunpack.c.l.b16 %v250
    %v383 = vunpack.c.h.b16 %v250
    %v384 = vunpack.c.l.b16 %v251
    %v385 = vunpack.c.h.b16 %v251
    %v386 = vunpack.c.l.b16 %v252
    %v387 = vunpack.c.h.b16 %v252
    %v388 = vunpack.c.l.b16 %v253
    %v389 = vunpack.c.h.b16 %v253
    %v390 = vunpack.c.l.b16 %v254
    %v391 = vunpack.c.h.b16 %v254
    %v392 = vunpack.c.l.b16 %v255
    %v393 = vunpack.c.h.b16 %v255
    %v394 = vunpack.c.l.b16 %v256
    %v395 = vunpack.c.h.b16 %v256
    %v396 = vunpack.c.l.b16 %v257
    %v397 = vunpack.c.h.b16 %v257
    %v398 = vunpack.c.l.b16 %v258
    %v399 = vunpack.c.h.b16 %v258
    %v400 = vunpack.c.l.b16 %v259
    %v401 = vunpack.c.h.b16 %v259
    %v402 = vunpack.c.l.b16 %v260
    %v403 = vunpack.c.h.b16 %v260
    %v404 = vunpack.c.l.b16 %v261
    %v405 = vunpack.c.h.b16 %v261
    %v406 = vunpack.c.l.b16 %v262
    %v407 = vunpack.c.h.b16 %v262
    %v408 = vunpack.c.l.b16 %v263
    %v409 = vunpack.c.h.b16 %v263
    %v410 = vunpack.c.l.b16 %v264
    %v411 = vunpack.c.h.b16 %v264
    %v412 = vunpack.c.l.b16 %v265
    %v413 = vunpack.c.h.b16 %v265
    %v414 = vunpack.c.l.b16 %v266
    %v415 = vunpack.c.h.b16 %v266
    %v416 = vunpack.c.l.b16 %v267
    %v417 = vunpack.c.h.b16 %v267
    %v418 = vunpack.c.l.b16 %v268
    %v419 = vunpack.c.h.b16 %v268
    %v420 = vunpack.c.l.b16 %v269
    %v421 = vunpack.c.h.b16 %v269
    %v422 = vunpack.c.l.b16 %v270
    %v423 = vunpack.c.h.b16 %v270
    %v424 = vunpack.c.l.b16 %v271
    %v425 = vunpack.c.h.b16 %v271
    %v426 = vunpack.c.l.b16 %v272
    %v427 = vunpack.c.h.b16 %v272
    %v428 = vunpack.c.l.b16 %v273
    %v429 = vunpack.c.h.b16 %v273
    %v430 = vpack.c.b16 %v336, %v334
    %v431 = vpack.c.b16 %v337, %v335
    %v432 = vpack.c.b16 %v340, %v338
    %v433 = vpack.c.b16 %v341, %v339
    %v434 = vpack.c.b16 %v344, %v342
    %v435 = vpack.c.b16 %v345, %v343
    %v436 = vpack.c.b16 %v348, %v346
    %v437 = vpack.c.b16 %v349, %v347
    %v438 = vpack.c.b16 %v352, %v350
    %v439 = vpack.c.b16 %v353, %v351
    %v440 = vpack.c.b16 %v356, %v354
    %v441 = vpack.c.b16 %v357, %v355
    %v442 = vpack.c.b16 %v360, %v358
    %v443 = vpack.c.b16 %v361, %v359
    %v444 = vpack.c.b16 %v364, %v362
    %v445 = vpack.c.b16 %v365, %v363
    %v446 = vpack.c.b16 %v368, %v366
    %v447 = vpack.c.b16 %v369, %v367
    %v448 = vpack.c.b16 %v372, %v370
    %v449 = vpack.c.b16 %v373, %v371
    %v450 = vpack.c.b16 %v376, %v374
    %v451 = vpack.c.b16 %v377, %v375
    %v452 = vpack.c.b16 %v380, %v378
    %v453 = vpack.c.b16 %v381, %v379
    %v454 = vpack.c.b16 %v384, %v382
    %v455 = vpack.c.b16 %v385, %v383
    %v456 = vpack.c.b16 %v388, %v386
    %v457 = vpack.c.b16 %v389, %v387
    %v458 = vpack.c.b16 %v392, %v390
    %v459 = vpack.c.b16 %v393, %v391
    %v460 = vpack.c.b16 %v396, %v394
    %v461 = vpack.c.b16 %v397, %v395
    %v462 = vpack.c.b16 %v400, %v398
    %v463 = vpack.c.b16 %v401, %v399
    %v464 = vpack.c.b16 %v404, %v402
    %v465 = vpack.c.b16 %v405, %v403
    %v466 = vpack.c.b16 %v408, %v406
    %v467 = vpack.c.b16 %v409, %v407
    %v468 = vpack.c.b16 %v412, %v410
    %v469 = vpack.c.b16 %v413, %v411
    %v470 = vpack.c.b16 %v416, %v414
    %v471 = vpack.c.b16 %v417, %v415
    %v472 = vpack.c.b16 %v420, %v418
    %v473 = vpack.c.b16 %v421, %v419
    %v474 = vpack.c.b16 %v424, %v422
    %v475 = vpack.c.b16 %v425, %v423
    %v476 = vpack.c.b16 %v428, %v426
    %v477 = vpack.c.b16 %v429, %v427
    %526 = vmatprep.subr.bf16.mxu0 %v431
    %527 = vmatpush1.bf16.msra.mxu0 %v430
    %528 = vmatprep.subr.bf16.mxu0 %v433
    %529 = vmatpush1.bf16.msra.mxu0 %v432
    %530 = vmatprep.subr.bf16.mxu0 %v435
    %531 = vmatpush1.bf16.msra.mxu0 %v434
    %532 = vmatprep.subr.bf16.mxu0 %v437
    %533 = vmatpush1.bf16.msra.mxu0 %v436
    %534 = vmatprep.subr.bf16.mxu0 %v439
    %535 = vmatpush1.bf16.msra.mxu0 %v438
    %536 = vmatprep.subr.bf16.mxu0 %v441
    %537 = vmatpush1.bf16.msra.mxu0 %v440
    %538 = vmatprep.subr.bf16.mxu0 %v443
    %539 = vmatpush1.bf16.msra.mxu0 %v442
    %540 = vmatprep.subr.bf16.mxu0 %v445
    %541 = vmatpush1.bf16.msra.mxu0 %v444
    %542 = vmatprep.subr.bf16.mxu0 %v447
    %543 = vmatpush1.bf16.msra.mxu0 %v446
    %544 = vmatprep.subr.bf16.mxu0 %v449
    %545 = vmatpush1.bf16.msra.mxu0 %v448
    %546 = vmatprep.subr.bf16.mxu0 %v451
    %547 = vmatpush1.bf16.msra.mxu0 %v450
    %548 = vmatprep.subr.bf16.mxu0 %v453
    %549 = vmatpush1.bf16.msra.mxu0 %v452
    %550 = vmatprep.subr.bf16.mxu0 %v455
    %551 = vmatpush1.bf16.msra.mxu0 %v454
    %552 = vmatprep.subr.bf16.mxu0 %v457
    %553 = vmatpush1.bf16.msra.mxu0 %v456
    %554 = vmatprep.subr.bf16.mxu0 %v459
    %555 = vmatpush1.bf16.msra.mxu0 %v458
    %556 = vmatprep.subr.bf16.mxu0 %v461
    %557 = vmatpush1.bf16.msra.mxu0 %v460
    %558 = vmatprep.mubr.bf16.mxu0 %v217
    %559 = vmatmul.mubr.bf16.gmra.mrb[0].mxu0 %v216
    %v560 = vpop.f32.mrb[0].mxu0
    %v561 = vadd.f32 %v279, %v560
    %v562 = vpop.f32.mrb[0].mxu0
    %v563 = vadd.f32 %v283, %v562
    %v564 = vpop.f32.mrb[0].mxu0
    %v565 = vadd.f32 %v279, %v564
    %v566 = vpop.f32.mrb[0].mxu0
    %v567 = vadd.f32 %v283, %v566
    %568 = vdwg.mxu0
    %569 = vmatprep.subr.bf16.mxu0 %v463
    %570 = vmatpush1.bf16.msra.mxu0 %v462
    %571 = vmatprep.subr.bf16.mxu0 %v465
    %572 = vmatpush1.bf16.msra.mxu0 %v464
    %573 = vmatprep.subr.bf16.mxu0 %v467
    %574 = vmatpush1.bf16.msra.mxu0 %v466
    %575 = vmatprep.subr.bf16.mxu0 %v469
    %576 = vmatpush1.bf16.msra.mxu0 %v468
    %577 = vmatprep.subr.bf16.mxu0 %v471
    %578 = vmatpush1.bf16.msra.mxu0 %v470
    %579 = vmatprep.subr.bf16.mxu0 %v473
    %580 = vmatpush1.bf16.msra.mxu0 %v472
    %581 = vmatprep.subr.bf16.mxu0 %v475
    %582 = vmatpush1.bf16.msra.mxu0 %v474
    %583 = vmatprep.subr.bf16.mxu0 %v477
    %584 = vmatpush1.bf16.msra.mxu0 %v476
    %585 = vmatprep.subr.bf16.mxu0 0
    %586 = vmatpush1.bf16.msra.mxu0 0
    %587 = vmatprep.subr.bf16.mxu0 0
    %588 = vmatpush1.bf16.msra.mxu0 0
    %589 = vmatprep.subr.bf16.mxu0 0
    %590 = vmatpush1.bf16.msra.mxu0 0
    %591 = vmatprep.subr.bf16.mxu0 0
    %592 = vmatpush1.bf16.msra.mxu0 0
    %593 = vmatprep.subr.bf16.mxu0 0
    %594 = vmatpush1.bf16.msra.mxu0 0
    %595 = vmatprep.subr.bf16.mxu0 0
    %596 = vmatpush1.bf16.msra.mxu0 0
    %597 = vmatprep.subr.bf16.mxu0 0
    %598 = vmatpush1.bf16.msra.mxu0 0
    %599 = vmatprep.subr.bf16.mxu0 0
    %600 = vmatpush1.bf16.msra.mxu0 0
    %601 = vmatprep.mubr.bf16.mxu0 0
    %602 = vmatmul.mubr.bf16.gmra.mrb[0].mxu0 %v225
    %v603 = vpop.f32.mrb[0].mxu0
    %v604 = vadd.f32 %v561, %v603
    %v605 = vpop.f32.mrb[0].mxu0
    %v606 = vadd.f32 %v563, %v605
    %v607 = vpop.f32.mrb[0].mxu0
    %v608 = vadd.f32 %v565, %v607
    %v609 = vpop.f32.mrb[0].mxu0
    %v610 = vadd.f32 %v567, %v609
    %611 = vdwg.mxu0
    %v612 = vxor.u32 %v606, 2147483648
    %v613 = vxor.u32 %v610, 2147483648
    %v614 = vmul.f32 %v612, 1.442695
    %v615 = vpow.pop %v614
    %v616 = vmul.f32 %v613, 1.442695
    %v617 = vpow.pop %v616
    %v618 = vadd.f32 %v615, 1.0
    %v619 = vadd.f32 %v617, 1.0
    %v620 = vrcp.pop %v618
    %v621 = vmul.f32 1.0, %v620
    %v622 = vrcp.pop %v619
    %v623 = vmul.f32 1.0, %v622
    %v624 = vmul.f32 %v604, %v621
    %v625 = vmul.f32 %v608, %v623
    %v626 = vadd.f32 %v624, %v164
    %v627 = vadd.f32 %v625, %v167
    %v628 = vmul.f32 %v626, 0.70710677
    %v629 = vmul.f32 %v627, 0.70710677
    %v630 = vrot.slane %v628, 7
    %v631 = vrot.slane %v629, 7
    %v632 = vsel %vm211, %v630, %v631
    %v633 = vsel %vm211, %v631, %v630
    %v634 = vmul.f32 %v633, %v201
    %v635 = vmul.f32 %v632, %v202
    %v636 = vpack.c.bf16 %v635, %v634
    %v637 = vpack.c.bf16 %v629, %v628
    %v638 = vrot.slane %v628, 1
    %v639 = vrot.slane %v629, 1
    %v640 = vsel %vm220, %v638, %v639
    %v641 = vsel %vm220, %v639, %v638
    %v642 = vmul.f32 %v640, %v207
    %v643 = vmul.f32 %v641, %v208
    %v644 = vpack.c.bf16 %v643, %v642
    %s645 = scalar_lea.vmem [#allocation7], 384
    %v646 = vld [vmem:[%s645] sm:$0xff]
    %v647 = vld [vmem:[%s645 + $0x8] sm:$0xff]
    %v648 = vld [vmem:[%s645 + $0x10] sm:$0xff]
    %v649 = vld [vmem:[%s645 + $0x18] sm:$0xff]
    %v650 = vld [vmem:[%s645 + $0x20] sm:$0xff]
    %v651 = vld [vmem:[%s645 + $0x28] sm:$0xff]
    %v652 = vld [vmem:[%s645 + $0x30] sm:$0xff]
    %v653 = vld [vmem:[%s645 + $0x38] sm:$0xff]
    %v654 = vld [vmem:[%s645 + $0x40] sm:$0xff]
    %v655 = vld [vmem:[%s645 + $0x48] sm:$0xff]
    %v656 = vld [vmem:[%s645 + $0x50] sm:$0xff]
    %v657 = vld [vmem:[%s645 + $0x58] sm:$0xff]
    %v658 = vld [vmem:[%s645 + $0x60] sm:$0xff]
    %v659 = vld [vmem:[%s645 + $0x68] sm:$0xff]
    %v660 = vld [vmem:[%s645 + $0x70] sm:$0xff]
    %v661 = vld [vmem:[%s645 + $0x78] sm:$0xff]
    %v662 = vld [vmem:[%s645 + $0x80] sm:$0xff]
    %v663 = vld [vmem:[%s645 + $0x88] sm:$0xff]
    %v664 = vld [vmem:[%s645 + $0x90] sm:$0xff]
    %v665 = vld [vmem:[%s645 + $0x98] sm:$0xff]
    %v666 = vld [vmem:[%s645 + $0xa0] sm:$0xff]
    %v667 = vld [vmem:[%s645 + $0xa8] sm:$0xff]
    %v668 = vld [vmem:[%s645 + $0xb0] sm:$0xff]
    %v669 = vld [vmem:[%s645 + $0xb8] sm:$0xff]
    %v670 = vld [vmem:[%s645 + $0xc0] sm:$0xff]
    %v671 = vld [vmem:[%s645 + $0xc8] sm:$0xff]
    %v672 = vld [vmem:[%s645 + $0xd0] sm:$0xff]
    %v673 = vld [vmem:[%s645 + $0xd8] sm:$0xff]
    %v674 = vld [vmem:[%s645 + $0xe0] sm:$0xff]
    %v675 = vld [vmem:[%s645 + $0xe8] sm:$0xff]
    %v676 = vld [vmem:[%s645 + $0xf0] sm:$0xff]
    %v677 = vld [vmem:[%s645 + $0xf8] sm:$0xff]
    %v678 = vld [vmem:[%s645 + $0x100] sm:$0xff]
    %v679 = vld [vmem:[%s645 + $0x108] sm:$0xff]
    %v680 = vld [vmem:[%s645 + $0x110] sm:$0xff]
    %v681 = vld [vmem:[%s645 + $0x118] sm:$0xff]
    %v682 = vld [vmem:[%s645 + $0x120] sm:$0xff]
    %v683 = vld [vmem:[%s645 + $0x128] sm:$0xff]
    %v684 = vld [vmem:[%s645 + $0x130] sm:$0xff]
    %v685 = vld [vmem:[%s645 + $0x138] sm:$0xff]
    %v686 = vld [vmem:[%s645 + $0x140] sm:$0xff]
    %v687 = vld [vmem:[%s645 + $0x148] sm:$0xff]
    %v688 = vld [vmem:[%s645 + $0x150] sm:$0xff]
    %v689 = vld [vmem:[%s645 + $0x158] sm:$0xff]
    %v690 = vld [vmem:[%s645 + $0x160] sm:$0xff]
    %v691 = vld [vmem:[%s645 + $0x168] sm:$0xff]
    %v692 = vld [vmem:[%s645 + $0x170] sm:$0xff]
    %v693 = vld [vmem:[%s645 + $0x178] sm:$0xff]
    %s694 = scalar_lea.vmem %s4, 2
    %v695 = vld [vmem:[%s694] sm:$0x3]
    %v697 = vlaneseq
    %v698 = vshrl.u32 %v697, 7
    %v699 = vsub.s32 0, %v698
    %v700 = vrot.slane %v695, %v699
    %v701 = vlaneseq
    %v702 = vshrl.u32 %v701, 7
    %v703 = vsub.s32 1, %v702
    %v704 = vrot.slane %v695, %v703
    %v755 = vunpack.c.l.b16 %v646
    %v756 = vunpack.c.h.b16 %v646
    %v757 = vunpack.c.l.b16 %v647
    %v758 = vunpack.c.h.b16 %v647
    %v759 = vunpack.c.l.b16 %v648
    %v760 = vunpack.c.h.b16 %v648
    %v761 = vunpack.c.l.b16 %v649
    %v762 = vunpack.c.h.b16 %v649
    %v763 = vunpack.c.l.b16 %v650
    %v764 = vunpack.c.h.b16 %v650
    %v765 = vunpack.c.l.b16 %v651
    %v766 = vunpack.c.h.b16 %v651
    %v767 = vunpack.c.l.b16 %v652
    %v768 = vunpack.c.h.b16 %v652
    %v769 = vunpack.c.l.b16 %v653
    %v770 = vunpack.c.h.b16 %v653
    %v771 = vunpack.c.l.b16 %v654
    %v772 = vunpack.c.h.b16 %v654
    %v773 = vunpack.c.l.b16 %v655
    %v774 = vunpack.c.h.b16 %v655
    %v775 = vunpack.c.l.b16 %v656
    %v776 = vunpack.c.h.b16 %v656
    %v777 = vunpack.c.l.b16 %v657
    %v778 = vunpack.c.h.b16 %v657
    %v779 = vunpack.c.l.b16 %v658
    %v780 = vunpack.c.h.b16 %v658
    %v781 = vunpack.c.l.b16 %v659
    %v782 = vunpack.c.h.b16 %v659
    %v783 = vunpack.c.l.b16 %v660
    %v784 = vunpack.c.h.b16 %v660
    %v785 = vunpack.c.l.b16 %v661
    %v786 = vunpack.c.h.b16 %v661
    %v787 = vunpack.c.l.b16 %v662
    %v788 = vunpack.c.h.b16 %v662
    %v789 = vunpack.c.l.b16 %v663
    %v790 = vunpack.c.h.b16 %v663
    %v791 = vunpack.c.l.b16 %v664
    %v792 = vunpack.c.h.b16 %v664
    %v793 = vunpack.c.l.b16 %v665
    %v794 = vunpack.c.h.b16 %v665
    %v795 = vunpack.c.l.b16 %v666
    %v796 = vunpack.c.h.b16 %v666
    %v797 = vunpack.c.l.b16 %v667
    %v798 = vunpack.c.h.b16 %v667
    %v799 = vunpack.c.l.b16 %v668
    %v800 = vunpack.c.h.b16 %v668
    %v801 = vunpack.c.l.b16 %v669
    %v802 = vunpack.c.h.b16 %v669
    %v803 = vunpack.c.l.b16 %v670
    %v804 = vunpack.c.h.b16 %v670
    %v805 = vunpack.c.l.b16 %v671
    %v806 = vunpack.c.h.b16 %v671
    %v807 = vunpack.c.l.b16 %v672
    %v808 = vunpack.c.h.b16 %v672
    %v809 = vunpack.c.l.b16 %v673
    %v810 = vunpack.c.h.b16 %v673
    %v811 = vunpack.c.l.b16 %v674
    %v812 = vunpack.c.h.b16 %v674
    %v813 = vunpack.c.l.b16 %v675
    %v814 = vunpack.c.h.b16 %v675
    %v815 = vunpack.c.l.b16 %v676
    %v816 = vunpack.c.h.b16 %v676
    %v817 = vunpack.c.l.b16 %v677
    %v818 = vunpack.c.h.b16 %v677
    %v819 = vunpack.c.l.b16 %v678
    %v820 = vunpack.c.h.b16 %v678
    %v821 = vunpack.c.l.b16 %v679
    %v822 = vunpack.c.h.b16 %v679
    %v823 = vunpack.c.l.b16 %v680
    %v824 = vunpack.c.h.b16 %v680
    %v825 = vunpack.c.l.b16 %v681
    %v826 = vunpack.c.h.b16 %v681
    %v827 = vunpack.c.l.b16 %v682
    %v828 = vunpack.c.h.b16 %v682
    %v829 = vunpack.c.l.b16 %v683
    %v830 = vunpack.c.h.b16 %v683
    %v831 = vunpack.c.l.b16 %v684
    %v832 = vunpack.c.h.b16 %v684
    %v833 = vunpack.c.l.b16 %v685
    %v834 = vunpack.c.h.b16 %v685
    %v835 = vunpack.c.l.b16 %v686
    %v836 = vunpack.c.h.b16 %v686
    %v837 = vunpack.c.l.b16 %v687
    %v838 = vunpack.c.h.b16 %v687
    %v839 = vunpack.c.l.b16 %v688
    %v840 = vunpack.c.h.b16 %v688
    %v841 = vunpack.c.l.b16 %v689
    %v842 = vunpack.c.h.b16 %v689
    %v843 = vunpack.c.l.b16 %v690
    %v844 = vunpack.c.h.b16 %v690
    %v845 = vunpack.c.l.b16 %v691
    %v846 = vunpack.c.h.b16 %v691
    %v847 = vunpack.c.l.b16 %v692
    %v848 = vunpack.c.h.b16 %v692
    %v849 = vunpack.c.l.b16 %v693
    %v850 = vunpack.c.h.b16 %v693
    %v851 = vpack.c.b16 %v757, %v755
    %v852 = vpack.c.b16 %v758, %v756
    %v853 = vpack.c.b16 %v761, %v759
    %v854 = vpack.c.b16 %v762, %v760
    %v855 = vpack.c.b16 %v765, %v763
    %v856 = vpack.c.b16 %v766, %v764
    %v857 = vpack.c.b16 %v769, %v767
    %v858 = vpack.c.b16 %v770, %v768
    %v859 = vpack.c.b16 %v773, %v771
    %v860 = vpack.c.b16 %v774, %v772
    %v861 = vpack.c.b16 %v777, %v775
    %v862 = vpack.c.b16 %v778, %v776
    %v863 = vpack.c.b16 %v781, %v779
    %v864 = vpack.c.b16 %v782, %v780
    %v865 = vpack.c.b16 %v785, %v783
    %v866 = vpack.c.b16 %v786, %v784
    %v867 = vpack.c.b16 %v789, %v787
    %v868 = vpack.c.b16 %v790, %v788
    %v869 = vpack.c.b16 %v793, %v791
    %v870 = vpack.c.b16 %v794, %v792
    %v871 = vpack.c.b16 %v797, %v795
    %v872 = vpack.c.b16 %v798, %v796
    %v873 = vpack.c.b16 %v801, %v799
    %v874 = vpack.c.b16 %v802, %v800
    %v875 = vpack.c.b16 %v805, %v803
    %v876 = vpack.c.b16 %v806, %v804
    %v877 = vpack.c.b16 %v809, %v807
    %v878 = vpack.c.b16 %v810, %v808
    %v879 = vpack.c.b16 %v813, %v811
    %v880 = vpack.c.b16 %v814, %v812
    %v881 = vpack.c.b16 %v817, %v815
    %v882 = vpack.c.b16 %v818, %v816
    %v883 = vpack.c.b16 %v821, %v819
    %v884 = vpack.c.b16 %v822, %v820
    %v885 = vpack.c.b16 %v825, %v823
    %v886 = vpack.c.b16 %v826, %v824
    %v887 = vpack.c.b16 %v829, %v827
    %v888 = vpack.c.b16 %v830, %v828
    %v889 = vpack.c.b16 %v833, %v831
    %v890 = vpack.c.b16 %v834, %v832
    %v891 = vpack.c.b16 %v837, %v835
    %v892 = vpack.c.b16 %v838, %v836
    %v893 = vpack.c.b16 %v841, %v839
    %v894 = vpack.c.b16 %v842, %v840
    %v895 = vpack.c.b16 %v845, %v843
    %v896 = vpack.c.b16 %v846, %v844
    %v897 = vpack.c.b16 %v849, %v847
    %v898 = vpack.c.b16 %v850, %v848
    %947 = vmatprep.subr.bf16.mxu0 %v852
    %948 = vmatpush1.bf16.msra.mxu0 %v851
    %949 = vmatprep.subr.bf16.mxu0 %v854
    %950 = vmatpush1.bf16.msra.mxu0 %v853
    %951 = vmatprep.subr.bf16.mxu0 %v856
    %952 = vmatpush1.bf16.msra.mxu0 %v855
    %953 = vmatprep.subr.bf16.mxu0 %v858
    %954 = vmatpush1.bf16.msra.mxu0 %v857
    %955 = vmatprep.subr.bf16.mxu0 %v860
    %956 = vmatpush1.bf16.msra.mxu0 %v859
    %957 = vmatprep.subr.bf16.mxu0 %v862
    %958 = vmatpush1.bf16.msra.mxu0 %v861
    %959 = vmatprep.subr.bf16.mxu0 %v864
    %960 = vmatpush1.bf16.msra.mxu0 %v863
    %961 = vmatprep.subr.bf16.mxu0 %v866
    %962 = vmatpush1.bf16.msra.mxu0 %v865
    %963 = vmatprep.subr.bf16.mxu0 %v868
    %964 = vmatpush1.bf16.msra.mxu0 %v867
    %965 = vmatprep.subr.bf16.mxu0 %v870
    %966 = vmatpush1.bf16.msra.mxu0 %v869
    %967 = vmatprep.subr.bf16.mxu0 %v872
    %968 = vmatpush1.bf16.msra.mxu0 %v871
    %969 = vmatprep.subr.bf16.mxu0 %v874
    %970 = vmatpush1.bf16.msra.mxu0 %v873
    %971 = vmatprep.subr.bf16.mxu0 %v876
    %972 = vmatpush1.bf16.msra.mxu0 %v875
    %973 = vmatprep.subr.bf16.mxu0 %v878
    %974 = vmatpush1.bf16.msra.mxu0 %v877
    %975 = vmatprep.subr.bf16.mxu0 %v880
    %976 = vmatpush1.bf16.msra.mxu0 %v879
    %977 = vmatprep.subr.bf16.mxu0 %v882
    %978 = vmatpush1.bf16.msra.mxu0 %v881
    %979 = vmatprep.mubr.bf16.mxu0 %v637
    %980 = vmatmul.mubr.bf16.gmra.mrb[0].mxu0 %v636
    %v981 = vpop.f32.mrb[0].mxu0
    %v982 = vadd.f32 %v700, %v981
    %v983 = vpop.f32.mrb[0].mxu0
    %v984 = vadd.f32 %v704, %v983
    %v985 = vpop.f32.mrb[0].mxu0
    %v986 = vadd.f32 %v700, %v985
    %v987 = vpop.f32.mrb[0].mxu0
    %v988 = vadd.f32 %v704, %v987
    %989 = vdwg.mxu0
    %990 = vmatprep.subr.bf16.mxu0 %v884
    %991 = vmatpush1.bf16.msra.mxu0 %v883
    %992 = vmatprep.subr.bf16.mxu0 %v886
    %993 = vmatpush1.bf16.msra.mxu0 %v885
    %994 = vmatprep.subr.bf16.mxu0 %v888
    %995 = vmatpush1.bf16.msra.mxu0 %v887
    %996 = vmatprep.subr.bf16.mxu0 %v890
    %997 = vmatpush1.bf16.msra.mxu0 %v889
    %998 = vmatprep.subr.bf16.mxu0 %v892
    %999 = vmatpush1.bf16.msra.mxu0 %v891
    %1000 = vmatprep.subr.bf16.mxu0 %v894
    %1001 = vmatpush1.bf16.msra.mxu0 %v893
    %1002 = vmatprep.subr.bf16.mxu0 %v896
    %1003 = vmatpush1.bf16.msra.mxu0 %v895
    %1004 = vmatprep.subr.bf16.mxu0 %v898
    %1005 = vmatpush1.bf16.msra.mxu0 %v897
    %1006 = vmatprep.subr.bf16.mxu0 0
    %1007 = vmatpush1.bf16.msra.mxu0 0
    %1008 = vmatprep.subr.bf16.mxu0 0
    %1009 = vmatpush1.bf16.msra.mxu0 0
    %1010 = vmatprep.subr.bf16.mxu0 0
    %1011 = vmatpush1.bf16.msra.mxu0 0
    %1012 = vmatprep.subr.bf16.mxu0 0
    %1013 = vmatpush1.bf16.msra.mxu0 0
    %1014 = vmatprep.subr.bf16.mxu0 0
    %1015 = vmatpush1.bf16.msra.mxu0 0
    %1016 = vmatprep.subr.bf16.mxu0 0
    %1017 = vmatpush1.bf16.msra.mxu0 0
    %1018 = vmatprep.subr.bf16.mxu0 0
    %1019 = vmatpush1.bf16.msra.mxu0 0
    %1020 = vmatprep.subr.bf16.mxu0 0
    %1021 = vmatpush1.bf16.msra.mxu0 0
    %1022 = vmatprep.mubr.bf16.mxu0 0
    %1023 = vmatmul.mubr.bf16.gmra.mrb[0].mxu0 %v644
    %v1024 = vpop.f32.mrb[0].mxu0
    %v1025 = vadd.f32 %v982, %v1024
    %v1026 = vpop.f32.mrb[0].mxu0
    %v1027 = vadd.f32 %v984, %v1026
    %v1028 = vpop.f32.mrb[0].mxu0
    %v1029 = vadd.f32 %v986, %v1028
    %v1030 = vpop.f32.mrb[0].mxu0
    %v1031 = vadd.f32 %v988, %v1030
    %1032 = vdwg.mxu0
    %v1033 = vxor.u32 %v1027, 2147483648
    %v1034 = vxor.u32 %v1031, 2147483648
    %v1035 = vmul.f32 %v1033, 1.442695
    %v1036 = vpow.pop %v1035
    %v1037 = vmul.f32 %v1034, 1.442695
    %v1038 = vpow.pop %v1037
    %v1039 = vadd.f32 %v1036, 1.0
    %v1040 = vadd.f32 %v1038, 1.0
    %v1041 = vrcp.pop %v1039
    %v1042 = vmul.f32 1.0, %v1041
    %v1043 = vrcp.pop %v1040
    %v1044 = vmul.f32 1.0, %v1043
    %v1045 = vmul.f32 %v1025, %v1042
    %v1046 = vmul.f32 %v1029, %v1044
    %v1047 = vadd.f32 %v1045, %v628
    %v1048 = vadd.f32 %v1046, %v629
    %v1049 = vmul.f32 %v1047, 0.70710677
    %v1050 = vmul.f32 %v1048, 0.70710677
    %v1051 = vpack.c.bf16 %v1050, %v1049
    %v1052 = vld [vmem:[#allocation8] sm:$0xf]
    %v1053 = vld [vmem:[#allocation8 + $0x4] sm:$0xf]
    %v1054 = vld [vmem:[#allocation8 + $0x8] sm:$0xf]
    %v1055 = vld [vmem:[#allocation8 + $0xc] sm:$0xf]
    %v1056 = vld [vmem:[#allocation8 + $0x10] sm:$0xf]
    %v1057 = vld [vmem:[#allocation8 + $0x14] sm:$0xf]
    %v1058 = vld [vmem:[#allocation8 + $0x18] sm:$0xf]
    %v1059 = vld [vmem:[#allocation8 + $0x1c] sm:$0xf]
    %v1060 = vld [vmem:[#allocation8 + $0x20] sm:$0xf]
    %v1061 = vld [vmem:[#allocation8 + $0x24] sm:$0xf]
    %v1062 = vld [vmem:[#allocation8 + $0x28] sm:$0xf]
    %v1063 = vld [vmem:[#allocation8 + $0x2c] sm:$0xf]
    %v1064 = vld [vmem:[#allocation8 + $0x30] sm:$0xf]
    %v1065 = vld [vmem:[#allocation8 + $0x34] sm:$0xf]
    %v1066 = vld [vmem:[#allocation8 + $0x38] sm:$0xf]
    %v1067 = vld [vmem:[#allocation8 + $0x3c] sm:$0xf]
    %v1068 = vld [vmem:[%s6] sm:$0x1]
    %v1070 = vlaneseq
    %v1071 = vshrl.u32 %v1070, 7
    %v1072 = vsub.s32 0, %v1071
    %v1073 = vrot.slane %v1068, %v1072
    %v1091 = vunpack.c.l.b16 %v1052
    %v1092 = vunpack.c.l.b16 %v1053
    %v1093 = vunpack.c.l.b16 %v1054
    %v1094 = vunpack.c.l.b16 %v1055
    %v1095 = vunpack.c.l.b16 %v1056
    %v1096 = vunpack.c.l.b16 %v1057
    %v1097 = vunpack.c.l.b16 %v1058
    %v1098 = vunpack.c.l.b16 %v1059
    %v1099 = vunpack.c.l.b16 %v1060
    %v1100 = vunpack.c.l.b16 %v1061
    %v1101 = vunpack.c.l.b16 %v1062
    %v1102 = vunpack.c.l.b16 %v1063
    %v1103 = vunpack.c.l.b16 %v1064
    %v1104 = vunpack.c.l.b16 %v1065
    %v1105 = vunpack.c.l.b16 %v1066
    %v1106 = vunpack.c.l.b16 %v1067
    %v1107 = vpack.c.b16 %v1092, %v1091
    %v1108 = vpack.c.b16 %v1094, %v1093
    %v1109 = vpack.c.b16 %v1096, %v1095
    %v1110 = vpack.c.b16 %v1098, %v1097
    %v1111 = vpack.c.b16 %v1100, %v1099
    %v1112 = vpack.c.b16 %v1102, %v1101
    %v1113 = vpack.c.b16 %v1104, %v1103
    %v1114 = vpack.c.b16 %v1106, %v1105
    %1123 = vmatprep.subr.bf16.mxu0 0
    %1124 = vmatpush1.bf16.msra.mxu0 %v1107
    %1125 = vmatprep.subr.bf16.mxu0 0
    %1126 = vmatpush1.bf16.msra.mxu0 %v1108
    %1127 = vmatprep.subr.bf16.mxu0 0
    %1128 = vmatpush1.bf16.msra.mxu0 %v1109
    %1129 = vmatprep.subr.bf16.mxu0 0
    %1130 = vmatpush1.bf16.msra.mxu0 %v1110
    %1131 = vmatprep.subr.bf16.mxu0 0
    %1132 = vmatpush1.bf16.msra.mxu0 %v1111
    %1133 = vmatprep.subr.bf16.mxu0 0
    %1134 = vmatpush1.bf16.msra.mxu0 %v1112
    %1135 = vmatprep.subr.bf16.mxu0 0
    %1136 = vmatpush1.bf16.msra.mxu0 %v1113
    %1137 = vmatprep.subr.bf16.mxu0 0
    %1138 = vmatpush1.bf16.msra.mxu0 %v1114
    %1139 = vmatprep.subr.bf16.mxu0 0
    %1140 = vmatpush1.bf16.msra.mxu0 0
    %1141 = vmatprep.subr.bf16.mxu0 0
    %1142 = vmatpush1.bf16.msra.mxu0 0
    %1143 = vmatprep.subr.bf16.mxu0 0
    %1144 = vmatpush1.bf16.msra.mxu0 0
    %1145 = vmatprep.subr.bf16.mxu0 0
    %1146 = vmatpush1.bf16.msra.mxu0 0
    %1147 = vmatprep.subr.bf16.mxu0 0
    %1148 = vmatpush1.bf16.msra.mxu0 0
    %1149 = vmatprep.subr.bf16.mxu0 0
    %1150 = vmatpush1.bf16.msra.mxu0 0
    %1151 = vmatprep.subr.bf16.mxu0 0
    %1152 = vmatpush1.bf16.msra.mxu0 0
    %1153 = vmatprep.subr.bf16.mxu0 0
    %1154 = vmatpush1.bf16.msra.mxu0 0
    %1155 = vmatprep.mubr.bf16.mxu0 0
    %1156 = vmatmul.mubr.bf16.gmra.mrb[0].mxu0 %v1051
    %v1157 = vpop.f32.mrb[0].mxu0
    %v1158 = vadd.f32 %v1073, %v1157
    %v1159 = vpop.f32.mrb[0].mxu0
    %v1160 = vpop.f32.mrb[0].mxu0
    %v1161 = vadd.f32 %v1073, %v1160
    %v1162 = vpop.f32.mrb[0].mxu0
    %1163 = vdwg.mxu0
    %v1164 = vmul.f32 %v83, 0.70710677
    %v1165 = vmul.f32 %v84, 0.70710677
    %1168 = vrot.lane.b32.xlu0 %v1164, 64
    %v1169 = vpop.permute.xlu0 %1168
    %1170 = vrot.lane.b32.xlu0 %v1165, 64
    %v1171 = vpop.permute.xlu0 %1170
    %v1174 = vsel %vm125, 0.0, %v1169
    %v1175 = vsel %vm125, 0.0, %v1171
    %v1176 = vadd.f32 %v1158, %v1174
    %v1177 = vadd.f32 %v1161, %v1175
    %1178 = vst [vmem:[#allocation10] sm:$0xff] %v1176
    %1179 = vst [vmem:[#allocation10 + $0x8] sm:$0xff] %v1177
    // Predicated region
    $region46: #{tpu_custom_call.1} parent=1 // pred_check
      _
    $region47: #{tpu_custom_call.1} parent=1 // pred_check_branch
      %1181 = sbr.rel (0) target = $region49
    $region48: #{tpu_custom_call.1} parent=1 // pred_region
      %s1183 = ssub.s32 256, 256
      %1184 = vsyncadd [#allocation4], %s1183
      %s1185 = sshll.u32 [#allocation10], 4
      %s1186 = int_to_ptr.vmem [resolvable:$true] %s1185
      %1191 = dma.vmem_to_hbm [thread:$0]  %s1186, 256, %s7, [#allocation4], 128, 128, 8
    $region49: #{tpu_custom_call.1} parent=1 // pred_fallthru
      _
    // Predicated region
    $region50: #{tpu_custom_call.1} parent=1 // pred_check
      _
    $region51: #{tpu_custom_call.1} parent=1 // pred_check_branch
      %1193 = sbr.rel (0) target = $region53
    $region52: #{tpu_custom_call.1} parent=1 // pred_region
      %1194 = dma.done [#allocation4], 256
    $region53: #{tpu_custom_call.1} parent=1 // pred_fallthru
      _
    %1195 = vsyncpa [#allocation3], 1
    %1196 = vsyncpa [#allocation6], 1
    %1197 = vsyncpa [#allocation9], 1
    %1198 = vsyncpa [#allocation4], 1

</llo_original>
